<compile_context>
chip_gen: v5e
topology: v5e:2x2
jax: 0.10.0
libtpu: 0.0.40
codegen_flags: <defaults>
</compile_context>

<pallas_src>
import functools

import jax
import jax.numpy as jnp
from jax.experimental import pallas as pl
from jax.experimental.pallas import tpu as pltpu


# ----------------------------- Pallas kernels ------------------------------ #

def embed_layernorm_kernel(tok_ref, pos_ref, typ_ref, g_ref, b_ref, out_ref):
    """Fused (token + position + type) embedding sum + LayerNorm, one batch block/step."""
    x = (tok_ref[...].astype(jnp.float32)
         + pos_ref[...].astype(jnp.float32)[None, :, :]
         + typ_ref[...].astype(jnp.float32)[None, :, :])        # (Bt, S, H) f32
    mu = jnp.mean(x, axis=-1, keepdims=True)
    var = jnp.mean((x - mu) ** 2, axis=-1, keepdims=True)
    y = (x - mu) * jax.lax.rsqrt(var + 1e-12) * g_ref[...] + b_ref[...]
    out_ref[...] = y.astype(out_ref.dtype)


def encoder_stack_kernel(x_ref, mask_ref,
                         wq_ref, bq_ref, wk_ref, bk_ref, wv_ref, bv_ref,
                         wo_ref, bo_ref, g1_ref, be1_ref,
                         w1_ref, b1_ref, w2_ref, b2_ref, g2_ref, be2_ref,
                         out_ref,
                         act_ref, h1f_ref, h1b_ref, acc_ref,
                         *, num_heads, head_dim, batch_tile, seq_len):
    """Full encoder stack.  grid = (batch_blocks, layers, ffn_k_tiles).

    The bf16 activation carry lives in VMEM scratch across the (layer, k) axes of a
    batch block.  Attention + first Add&LN run once per (batch block, layer) at k==0;
    the FFN is accumulated over K tiles of the intermediate dim; the second Add&LN
    runs at the last K tile, and the HBM output is written only at the last layer.
    """
    l = pl.program_id(1)
    kf = pl.program_id(2)
    Bt, S, NH, HD = batch_tile, seq_len, num_heads, head_dim
    H = NH * HD
    R = Bt * S

    def layer_norm(y, g_ref, b_ref):                            # f32 statistics
        mu = jnp.mean(y, axis=-1, keepdims=True)
        var = jnp.mean((y - mu) ** 2, axis=-1, keepdims=True)
        return (y - mu) * jax.lax.rsqrt(var + 1e-12) * g_ref[...] + b_ref[...]

    # Load this batch block into the activation carry once.
    @pl.when(jnp.logical_and(l == 0, kf == 0))
    def _load_activation():
        act_ref[...] = x_ref[...].reshape(R, H)

    # Attention + first Add&LN once per (batch block, layer).
    @pl.when(kf == 0)
    def _attention():
        x = act_ref[...]                                        # (R, H) bf16
        add_mask = mask_ref[...]                                # (Bt, 1, S) f32 additive

        def proj(w_ref, b_ref):                                 # bf16 MXU, f32 accumulate
            return jnp.dot(x, w_ref[...],
                           preferred_element_type=jnp.float32) + b_ref[...]

        q = proj(wq_ref, bq_ref).astype(jnp.bfloat16).reshape(Bt, S, NH, HD)
        k = proj(wk_ref, bk_ref).astype(jnp.bfloat16).reshape(Bt, S, NH, HD)
        v = proj(wv_ref, bv_ref).astype(jnp.bfloat16).reshape(Bt, S, NH, HD)

        scale = HD ** -0.5
        ctx_rows = []
        for bi in range(Bt):     # short static loop; heads stay batched in one einsum
            s = jnp.einsum("qhd,khd->hqk", q[bi], k[bi],
                           preferred_element_type=jnp.float32)   # (NH, S, S)
            s = s * scale + add_mask[bi].reshape(1, 1, S)
            s = s - jnp.max(s, axis=-1, keepdims=True)
            p = jnp.exp(s)
            p = p * pl.reciprocal(jnp.sum(p, axis=-1, keepdims=True), approx=True)
            ctx = jnp.einsum("hqk,khd->qhd", p.astype(jnp.bfloat16), v[bi],
                             preferred_element_type=jnp.float32)  # (S, NH, HD)
            ctx_rows.append(ctx.reshape(S, H))
        ctx = jnp.concatenate(ctx_rows, axis=0).astype(jnp.bfloat16)  # (R, H)

        attn = jnp.dot(ctx, wo_ref[...],
                       preferred_element_type=jnp.float32) + bo_ref[...]
        h1 = layer_norm(x.astype(jnp.float32) + attn, g1_ref, be1_ref)
        h1f_ref[...] = h1
        h1b_ref[...] = h1.astype(jnp.bfloat16)   # cast once, reused by every FFN K tile

    # FFN K tile: part = gelu(h1 @ w1[:, tile] + b1[tile]) @ w2[tile, :]
    ff = jnp.dot(h1b_ref[...], w1_ref[...],
                 preferred_element_type=jnp.float32) + b1_ref[...]
    # TODO(synk): HF BERT/ELECTRA use the exact erf GELU; tanh approximation kept here.
    ff = jax.nn.gelu(ff, approximate=True)
    part = jnp.dot(ff.astype(jnp.bfloat16), w2_ref[...],
                   preferred_element_type=jnp.float32)

    @pl.when(kf == 0)
    def _acc_set():
        acc_ref[...] = part              # first tile assigns (no zero-fill pass)

    @pl.when(kf > 0)
    def _acc_add():
        acc_ref[...] += part

    last_k = kf == pl.num_programs(2) - 1

    @pl.when(last_k)
    def _finalize_layer():
        y = layer_norm(h1f_ref[...] + acc_ref[...] + b2_ref[...], g2_ref, be2_ref)
        act_ref[...] = y.astype(jnp.bfloat16)

    @pl.when(jnp.logical_and(last_k, l == pl.num_programs(1) - 1))
    def _store_output():
        out_ref[...] = act_ref[...].reshape(Bt, S, H)


def mean_pool_kernel(x_ref, out_ref):
    # torch: subword_embeddings.mean(dim=1) -- unmasked mean over the sequence dim.
    out_ref[...] = jnp.mean(x_ref[...].astype(jnp.float32), axis=1, keepdims=True)
# TODO(synk): "word-level" pooling needs the HF tokenizer to estimate word offsets
# (string processing); it has no Pallas equivalent and is not implemented here.


# ------------------------------ JAX wrapper -------------------------------- #

def _vmem_limit_bytes():
    # ~3/4 of physical VMEM: leaves Mosaic internal-scratch/spill headroom (matters
    # most on v7x's 64 MiB per-TC VMEM).  Conservative fallback if the query fails.
    try:
        return int(pltpu.get_tpu_info().vmem_capacity_bytes * 3 // 4)
    except Exception:
        return 48 * 1024 * 1024


def _pick_batch_tile(B, S, max_rows=512):
    """Largest divisor of B with Bt*S <= max_rows; prefer >=2 batch blocks for the
    v7x megacore when per-block rows still fill the MXU M dim (>=128 rows)."""
    divisors = [d for d in range(1, B + 1) if B % d == 0]
    fitting = [d for d in divisors if d * S <= max_rows] or [1]
    bt = max(fitting)
    for d in sorted(fitting, reverse=True):
        if B // d >= 2 and d * S >= 128:
            return d
    return bt


def _pick_ffn_tile(H, FFN, rows, vmem_limit):
    """Largest 128-aligned FFN K tile (or full FFN) fitting a conservative VMEM budget."""
    fixed = (rows * H * 2 * 2 * 2            # x in + out blocks, double-buffered bf16
             + 4 * H * H * 2 * 2             # q/k/v/o weights, double-buffered bf16
             + 12 * H * 4 * 2                # biases + LN params (f32), double-buffered
             + rows * H * (2 + 4 + 2 + 4))   # act / h1_f32 / h1_bf16 / acc scratch
    budget = int(vmem_limit * 0.6) - fixed
    candidates = sorted({t for t in (FFN, 4096, 2048, 1024, 512, 256, 128)
                         if 0 < t <= FFN and FFN % t == 0
                         and (t % 128 == 0 or t == FFN)},
                        reverse=True)
    for t in candidates:
        tile_bytes = (H * t * 2 + t * 4 + t * H * 2) * 2  # w1/b1/w2 tiles, 2 buffers
        if tile_bytes <= budget:
            return t
    return candidates[-1] if candidates else FFN


def init_params(key, *, vocab, max_pos, type_vocab, hidden, ffn, layers):
    ks = jax.random.split(key, 16)

    def nrm(k, shape, dtype=jnp.float32):
        return (jax.random.normal(k, shape, jnp.float32) * 0.02).astype(dtype)

    z = lambda shape: jnp.zeros(shape, jnp.float32)
    o = lambda shape: jnp.ones(shape, jnp.float32)
    L, H, F = layers, hidden, ffn
    # Layer weights are stacked along a leading L axis so the encoder kernel can index
    # them with a layer grid axis (next layer's weights prefetch during this layer).
    return {
        "tok_emb": nrm(ks[0], (vocab, H), jnp.bfloat16),
        "pos_emb": nrm(ks[1], (max_pos, H), jnp.bfloat16),
        "typ_emb": nrm(ks[2], (type_vocab, H), jnp.bfloat16),
        "emb_ln_g": o((1, H)), "emb_ln_b": z((1, H)),
        "wq": nrm(ks[3], (L, H, H), jnp.bfloat16), "bq": z((L, 1, H)),
        "wk": nrm(ks[4], (L, H, H), jnp.bfloat16), "bk": z((L, 1, H)),
        "wv": nrm(ks[5], (L, H, H), jnp.bfloat16), "bv": z((L, 1, H)),
        "wo": nrm(ks[6], (L, H, H), jnp.bfloat16), "bo": z((L, 1, H)),
        "g1": o((L, 1, H)), "be1": z((L, 1, H)),
        "w1": nrm(ks[7], (L, H, F), jnp.bfloat16), "b1": z((L, 1, F)),
        "w2": nrm(ks[8], (L, F, H), jnp.bfloat16), "b2": z((L, 1, H)),
        "g2": o((L, 1, H)), "be2": z((L, 1, H)),
    }


def language_model_forward(params, input_ids, attention_mask, *, num_heads,
                           pooling="cls", cls_position=0,
                           batch_tile=None, ffn_tile=None):
    if pooling not in ("cls", "mean"):
        raise ValueError(f"Unsupported pooling `{pooling}` (use 'cls' or 'mean').")
    B, S = input_ids.shape
    H = params["tok_emb"].shape[1]
    L, _, FFN = params["w1"].shape
    assert H % num_heads == 0
    head_dim = H // num_heads

    vmem_limit = _vmem_limit_bytes()
    if batch_tile is None:
        batch_tile = _pick_batch_tile(B, S)
    assert B % batch_tile == 0
    nb = B // batch_tile
    rows = batch_tile * S
    if ffn_tile is None:
        ffn_tile = _pick_ffn_tile(H, FFN, rows, vmem_limit)
    assert FFN % ffn_tile == 0
    nk = FFN // ffn_tile

    # --- embeddings: the token gather stays in plain JAX (data-dependent row gather);
    #     the pos/type adds + LayerNorm + f32->bf16 cast are fused in one kernel so the
    #     summed activation never round-trips HBM in f32.  token_type_ids default to 0.
    tok = params["tok_emb"][input_ids]      # (B, S, H) bf16
    pos = params["pos_emb"][:S]             # (S, H) bf16
    typ = params["typ_emb"][0:1]            # (1, H) bf16

    x = pl.pallas_call(
        embed_layernorm_kernel,
        out_shape=jax.ShapeDtypeStruct((B, S, H), jnp.bfloat16),
        grid_spec=pl.GridSpec(
            grid=(nb,),
            in_specs=[pl.BlockSpec((batch_tile, S, H), lambda b: (b, 0, 0)),
                      pl.BlockSpec((S, H), lambda b: (0, 0)),
                      pl.BlockSpec((1, H), lambda b: (0, 0)),
                      pl.BlockSpec((1, H), lambda b: (0, 0)),
                      pl.BlockSpec((1, H), lambda b: (0, 0))],
            out_specs=pl.BlockSpec((batch_tile, S, H), lambda b: (b, 0, 0)),
        ),
        compiler_params=pltpu.CompilerParams(
            dimension_semantics=("parallel",), vmem_limit_bytes=vmem_limit),
    )(tok, pos, typ, params["emb_ln_g"], params["emb_ln_b"])

    # additive attention mask: 0 where attended, -1e9 where padded
    add_mask = ((1.0 - attention_mask.astype(jnp.float32)) * -1e9).reshape(B, 1, S)

    # --- encoder stack: ONE pallas_call over (batch_blocks, layers, ffn_k_tiles) ---
    wnames = ["wq", "bq", "wk", "bk", "wv", "bv", "wo", "bo",
              "g1", "be1", "w1", "b1", "w2", "b2", "g2", "be2"]
    per_layer_spec = {
        "w1": pl.BlockSpec((None, H, ffn_tile), lambda bb, l, k: (l, 0, k)),
        "b1": pl.BlockSpec((None, 1, ffn_tile), lambda bb, l, k: (l, 0, k)),
        "w2": pl.BlockSpec((None, ffn_tile, H), lambda bb, l, k: (l, k, 0)),
    }

    def default_spec(name):
        shp = params[name].shape     # (L, d0, d1); layer-indexed, double-buffered
        return pl.BlockSpec((None, shp[1], shp[2]), lambda bb, l, k: (l, 0, 0))

    in_specs = (
        [pl.BlockSpec((batch_tile, S, H), lambda bb, l, k: (bb, 0, 0)),   # activations
         pl.BlockSpec((batch_tile, 1, S), lambda bb, l, k: (bb, 0, 0))]   # additive mask
        + [per_layer_spec.get(n, default_spec(n)) for n in wnames]
    )

    x = pl.pallas_call(
        functools.partial(encoder_stack_kernel, num_heads=num_heads,
                          head_dim=head_dim, batch_tile=batch_tile, seq_len=S),
        out_shape=jax.ShapeDtypeStruct((B, S, H), jnp.bfloat16),
        grid_spec=pltpu.PrefetchScalarGridSpec(
            num_scalar_prefetch=0,
            grid=(nb, L, nk),
            in_specs=in_specs,
            out_specs=pl.BlockSpec((batch_tile, S, H), lambda bb, l, k: (bb, 0, 0)),
            scratch_shapes=[pltpu.VMEM((rows, H), jnp.bfloat16),   # activation carry
                            pltpu.VMEM((rows, H), jnp.float32),    # h1 (post-attn LN) f32
                            pltpu.VMEM((rows, H), jnp.bfloat16),   # h1 bf16 FFN operand
                            pltpu.VMEM((rows, H), jnp.float32)],   # FFN accumulator
        ),
        compiler_params=pltpu.CompilerParams(
            dimension_semantics=("parallel", "arbitrary", "arbitrary"),
            vmem_limit_bytes=vmem_limit),
    )(x, add_mask, *[params[n] for n in wnames])

    # --- pooling ---
    if pooling == "cls":
        cls_index = cls_position if cls_position >= 0 else S + cls_position
        if not 0 <= cls_index < S:
            raise ValueError(f"cls_position {cls_position} out of range for S={S}")
        # CLS pooling needs a single row per sequence: a plain XLA slice DMAs only that
        # row (a kernel here would stream the full (S, H) slab just to keep one row).
        return x[:, cls_index, :].astype(jnp.float32)

    pooled = pl.pallas_call(
        mean_pool_kernel,
        out_shape=jax.ShapeDtypeStruct((B, 1, H), jnp.float32),
        grid_spec=pl.GridSpec(
            grid=(nb,),
            in_specs=[pl.BlockSpec((batch_tile, S, H), lambda b: (b, 0, 0))],
            out_specs=pl.BlockSpec((batch_tile, 1, H), lambda b: (b, 0, 0)),
        ),
        compiler_params=pltpu.CompilerParams(
            dimension_semantics=("parallel",), vmem_limit_bytes=vmem_limit),
    )(x)
    return pooled.reshape(B, H)


# --------------------------------- main ------------------------------------ #

if __name__ == "__main__":
    # Small but MXU/lane-friendly demo shapes: H multiple of 128, head_dim = 128
    # (fills the MXU contraction), S multiple of 16 (bf16 sublane packing).
    B, S, H, NH, FFN, L = 2, 16, 256, 2, 512, 2
    VOCAB, MAX_POS, TYPE_VOCAB = 100, 32, 2

    key = jax.random.PRNGKey(0)
    k_param, k_ids = jax.random.split(key)

    params = init_params(k_param, vocab=VOCAB, max_pos=MAX_POS,
                         type_vocab=TYPE_VOCAB, hidden=H, ffn=FFN, layers=L)

    input_ids = jax.random.randint(k_ids, (B, S), 0, VOCAB, dtype=jnp.int32)
    attention_mask = jnp.concatenate(
        [jnp.ones((1, S), jnp.int32),
         jnp.concatenate([jnp.ones((1, S - 4), jnp.int32),
                          jnp.zeros((1, 4), jnp.int32)], axis=1)],
        axis=0)                                                  # (B, S)

    cls_out = language_model_forward(params, input_ids, attention_mask,
                                     num_heads=NH, pooling="cls", cls_position=0)
    mean_out = language_model_forward(params, input_ids, attention_mask,
                                      num_heads=NH, pooling="mean")
    jax.block_until_ready((cls_out, mean_out))

    assert cls_out.shape == (B, H) and mean_out.shape == (B, H)
    assert bool(jnp.all(jnp.isfinite(cls_out))) and bool(jnp.all(jnp.isfinite(mean_out)))
    print("KERNEL_OK")
</pallas_src>

<mosaic_0001>
module attributes {stable_mosaic.version = 11 : i64} {
  func.func @embed_layernorm_kernel(%arg0: i32, %arg1: memref<2x16x256xbf16, #tpu.memory_space<vmem>>, %arg2: memref<16x256xbf16, #tpu.memory_space<vmem>>, %arg3: memref<1x256xbf16, #tpu.memory_space<vmem>>, %arg4: memref<1x256xf32, #tpu.memory_space<vmem>>, %arg5: memref<1x256xf32, #tpu.memory_space<vmem>>, %arg6: memref<2x16x256xbf16, #tpu.memory_space<vmem>>) attributes {dimension_semantics = [#tpu.dimension_semantics<parallel>], iteration_bounds = array<i64: 1>, scalar_prefetch = 0 : i64, scratch_operands = 0 : i64, tpu.core_type = #tpu.core_type<tc>, window_params = [{transform_indices = @transform_0, window_bounds = array<i64: 2, 16, 256>}, {pipeline_mode = #tpu.pipeline_mode<synchronous>, transform_indices = @transform_1, window_bounds = array<i64: 16, 256>}, {pipeline_mode = #tpu.pipeline_mode<synchronous>, transform_indices = @transform_2, window_bounds = array<i64: 1, 256>}, {pipeline_mode = #tpu.pipeline_mode<synchronous>, transform_indices = @transform_3, window_bounds = array<i64: 1, 256>}, {pipeline_mode = #tpu.pipeline_mode<synchronous>, transform_indices = @transform_4, window_bounds = array<i64: 1, 256>}, {transform_indices = @transform_5, window_bounds = array<i64: 2, 16, 256>}]} {
    %c0 = arith.constant 0 : index
    %c0_0 = arith.constant 0 : index
    %c0_1 = arith.constant 0 : index
    %0 = vector.load %arg1[%c0, %c0_0, %c0_1] : memref<2x16x256xbf16, #tpu.memory_space<vmem>>, vector<2x16x256xbf16>
    %1 = arith.extf %0 : vector<2x16x256xbf16> to vector<2x16x256xf32>
    %c0_2 = arith.constant 0 : index
    %c0_3 = arith.constant 0 : index
    %2 = vector.load %arg2[%c0_2, %c0_3] : memref<16x256xbf16, #tpu.memory_space<vmem>>, vector<16x256xbf16>
    %3 = arith.extf %2 : vector<16x256xbf16> to vector<16x256xf32>
    %4 = vector.shape_cast %3 : vector<16x256xf32> to vector<1x16x256xf32>
    %5 = vector.broadcast %4 : vector<1x16x256xf32> to vector<2x16x256xf32>
    %6 = arith.addf %1, %5 : vector<2x16x256xf32>
    %c0_4 = arith.constant 0 : index
    %c0_5 = arith.constant 0 : index
    %7 = vector.load %arg3[%c0_4, %c0_5] : memref<1x256xbf16, #tpu.memory_space<vmem>>, vector<1x256xbf16>
    %8 = arith.extf %7 : vector<1x256xbf16> to vector<1x256xf32>
    %9 = vector.shape_cast %8 : vector<1x256xf32> to vector<1x1x256xf32>
    %10 = vector.broadcast %9 : vector<1x1x256xf32> to vector<2x16x256xf32>
    %11 = arith.addf %6, %10 : vector<2x16x256xf32>
    %cst = arith.constant dense<0.000000e+00> : vector<2x16xf32>
    %12 = vector.multi_reduction <add>, %11, %cst [2] : vector<2x16x256xf32> to vector<2x16xf32>
    %13 = vector.shape_cast %12 : vector<2x16xf32> to vector<2x16x1xf32>
    %cst_6 = arith.constant 2.560000e+02 : f32
    %14 = vector.broadcast %cst_6 : f32 to vector<2x16x1xf32>
    %15 = arith.divf %13, %14 : vector<2x16x1xf32>
    %16 = vector.broadcast %15 : vector<2x16x1xf32> to vector<2x16x256xf32>
    %17 = arith.subf %11, %16 : vector<2x16x256xf32>
    %18 = arith.mulf %17, %17 : vector<2x16x256xf32>
    %cst_7 = arith.constant dense<0.000000e+00> : vector<2x16xf32>
    %19 = vector.multi_reduction <add>, %18, %cst_7 [2] : vector<2x16x256xf32> to vector<2x16xf32>
    %20 = vector.shape_cast %19 : vector<2x16xf32> to vector<2x16x1xf32>
    %cst_8 = arith.constant 2.560000e+02 : f32
    %21 = vector.broadcast %cst_8 : f32 to vector<2x16x1xf32>
    %22 = arith.divf %20, %21 : vector<2x16x1xf32>
    %23 = vector.broadcast %15 : vector<2x16x1xf32> to vector<2x16x256xf32>
    %24 = arith.subf %11, %23 : vector<2x16x256xf32>
    %cst_9 = arith.constant 9.99999996E-13 : f32
    %25 = vector.broadcast %cst_9 : f32 to vector<2x16x1xf32>
    %26 = arith.addf %22, %25 : vector<2x16x1xf32>
    %27 = math.rsqrt %26 : vector<2x16x1xf32>
    %28 = vector.broadcast %27 : vector<2x16x1xf32> to vector<2x16x256xf32>
    %29 = arith.mulf %24, %28 : vector<2x16x256xf32>
    %c0_10 = arith.constant 0 : index
    %c0_11 = arith.constant 0 : index
    %30 = vector.load %arg4[%c0_10, %c0_11] : memref<1x256xf32, #tpu.memory_space<vmem>>, vector<1x256xf32>
    %31 = vector.shape_cast %30 : vector<1x256xf32> to vector<1x1x256xf32>
    %32 = vector.broadcast %31 : vector<1x1x256xf32> to vector<2x16x256xf32>
    %33 = arith.mulf %29, %32 : vector<2x16x256xf32>
    %c0_12 = arith.constant 0 : index
    %c0_13 = arith.constant 0 : index
    %34 = vector.load %arg5[%c0_12, %c0_13] : memref<1x256xf32, #tpu.memory_space<vmem>>, vector<1x256xf32>
    %35 = vector.shape_cast %34 : vector<1x256xf32> to vector<1x1x256xf32>
    %36 = vector.broadcast %35 : vector<1x1x256xf32> to vector<2x16x256xf32>
    %37 = arith.addf %33, %36 : vector<2x16x256xf32>
    %38 = arith.truncf %37 : vector<2x16x256xf32> to vector<2x16x256xbf16>
    %c0_14 = arith.constant 0 : index
    %c0_15 = arith.constant 0 : index
    %c0_16 = arith.constant 0 : index
    %39 = vector.load %arg6[%c0_14, %c0_15, %c0_16] : memref<2x16x256xbf16, #tpu.memory_space<vmem>>, vector<2x16x256xbf16>
    tpu.vector_store %arg6[%c0_14, %c0_15, %c0_16], %38 {strides = array<i32>} : memref<2x16x256xbf16, #tpu.memory_space<vmem>>, vector<2x16x256xbf16>,
    return
  }
  func.func @transform_0(%arg0: i32) -> (i32, i32, i32) {
    %c0_i32 = arith.constant 0 : i32
    %c0_i32_0 = arith.constant 0 : i32
    %c0_i32_1 = arith.constant 0 : i32
    return %arg0, %c0_i32, %c0_i32_0 : i32, i32, i32
  }
  func.func @transform_1(%arg0: i32) -> (i32, i32) {
    %c0_i32 = arith.constant 0 : i32
    %c0_i32_0 = arith.constant 0 : i32
    %c0_i32_1 = arith.constant 0 : i32
    return %c0_i32, %c0_i32_0 : i32, i32
  }
  func.func @transform_2(%arg0: i32) -> (i32, i32) {
    %c0_i32 = arith.constant 0 : i32
    %c0_i32_0 = arith.constant 0 : i32
    %c0_i32_1 = arith.constant 0 : i32
    return %c0_i32, %c0_i32_0 : i32, i32
  }
  func.func @transform_3(%arg0: i32) -> (i32, i32) {
    %c0_i32 = arith.constant 0 : i32
    %c0_i32_0 = arith.constant 0 : i32
    %c0_i32_1 = arith.constant 0 : i32
    return %c0_i32, %c0_i32_0 : i32, i32
  }
  func.func @transform_4(%arg0: i32) -> (i32, i32) {
    %c0_i32 = arith.constant 0 : i32
    %c0_i32_0 = arith.constant 0 : i32
    %c0_i32_1 = arith.constant 0 : i32
    return %c0_i32, %c0_i32_0 : i32, i32
  }
  func.func @transform_5(%arg0: i32) -> (i32, i32, i32) {
    %c0_i32 = arith.constant 0 : i32
    %c0_i32_0 = arith.constant 0 : i32
    %c0_i32_1 = arith.constant 0 : i32
    return %arg0, %c0_i32, %c0_i32_0 : i32, i32, i32
  }
}

</mosaic_0001>

<llo_original>
// kernel: tpu_custom_call.1
$region0: #{tpu_custom_call.1}
  #allocation0 [shape = 'u32[]', space=smem, size = 0x4, offset = 0x4, fixed_abs, tag = 'smem constant byte address 0x4 - core index']
  #allocation1 [shape = 'u32[72,128]{1,0:T(1,128)}', space=vmem, size = 0x9000, scoped, tag = 'internal scratch']
  %s0 = inlined_call_operand.hbm [shape: bf16[2,16,256], index: 0, kind: input, shape index: {}]
  %s1 = inlined_call_operand.hbm [shape: bf16[16,256], index: 1, kind: input, shape index: {}]
  %s2 = inlined_call_operand.hbm [shape: bf16[1,256], index: 2, kind: input, shape index: {}]
  %s3 = inlined_call_operand.vmem [shape: f32[1,256], index: 3, kind: input, shape index: {}]
  %s4 = inlined_call_operand.hbm [shape: f32[1,256], index: 4, kind: input, shape index: {}]
  %s5 = inlined_call_operand.hbm [shape: bf16[2,16,256], index: 5, kind: output, shape index: {}]
  %s6 = sld [smem:[#allocation0]]
  $region46: #{tpu_custom_call.1} parent=0
    _
  %s8 = ssub.s32 1, %s6
  %s9 = scalar_select 0, %s8, %s6
  $region1: #{tpu_custom_call.1} parent=0
    #allocation2 [shape = 'u8[16384]{0}', space=vmem, size = 0x4000, scoped, tag = 'input window, operand 0, single buffered']
    #allocation3 [shape = 's32[1]{0}', space=sflag, size = 0x4, scoped, tag = 'scoped memory for tpu_custom_call.1']
    #allocation4 [shape = 's32[1]{0}', space=sflag, size = 0x4, scoped, tag = 'scoped memory for tpu_custom_call.1']
    #allocation5 [shape = 'u8[8192]{0}', space=vmem, size = 0x2000, scoped, tag = 'input window, operand 1, single buffered']
    #allocation6 [shape = 's32[1]{0}', space=sflag, size = 0x4, scoped, tag = 'scoped memory for tpu_custom_call.1']
    #allocation7 [shape = 'u8[1024]{0}', space=vmem, size = 0x400, scoped, tag = 'input window, operand 2, single buffered']
    #allocation8 [shape = 'u8[1024]{0}', space=vmem, size = 0x400, scoped, tag = 'input window, operand 4, single buffered']
    #allocation9 [shape = 's32[1]{0}', space=sflag, size = 0x4, scoped, tag = 'scoped memory for tpu_custom_call.1']
    #allocation10 [shape = 'u8[16384]{0}', space=vmem, size = 0x4000, scoped, tag = 'output window, operand 0, single buffered']
    %10 = vsyncpa [#allocation3], 0
    %11 = vsyncpa [#allocation6], 0
    %12 = vsyncpa [#allocation9], 0
    %13 = vsyncpa [#allocation4], 0
    // Predicated region
    $region2: #{tpu_custom_call.1} parent=1 // pred_check
      _
    $region3: #{tpu_custom_call.1} parent=1 // pred_check_branch
      %15 = sbr.rel (0) target = $region5
    $region4: #{tpu_custom_call.1} parent=1 // pred_region
      %17 = vsyncadd [#allocation3], 0
      %s18 = sshll.u32 %s0, 4
      %s19 = int_to_ptr.hbm [resolvable:$true] %s18
      %s20 = sshll.u32 [#allocation2], 4
      %s21 = int_to_ptr.vmem [resolvable:$true] %s20
      %26 = dma.hbm_to_vmem [thread:$0]  %s19, 512, %s21, [#allocation3], 128, 128, 8
    $region5: #{tpu_custom_call.1} parent=1 // pred_fallthru
      _
    // Predicated region
    $region6: #{tpu_custom_call.1} parent=1 // pred_check
      _
    $region7: #{tpu_custom_call.1} parent=1 // pred_check_branch
      %28 = sbr.rel (0) target = $region9
    $region8: #{tpu_custom_call.1} parent=1 // pred_region
      %30 = vsyncadd [#allocation6], 0
      %s31 = sshll.u32 %s1, 4
      %s32 = int_to_ptr.hbm [resolvable:$true] %s31
      %s33 = sshll.u32 [#allocation5], 4
      %s34 = int_to_ptr.vmem [resolvable:$true] %s33
      %39 = dma.hbm_to_vmem [thread:$0]  %s32, 256, %s34, [#allocation6], 128, 128, 8
    $region9: #{tpu_custom_call.1} parent=1 // pred_fallthru
      _
    // Predicated region
    $region10: #{tpu_custom_call.1} parent=1 // pred_check
      _
    $region11: #{tpu_custom_call.1} parent=1 // pred_check_branch
      %41 = sbr.rel (0) target = $region13
    $region12: #{tpu_custom_call.1} parent=1 // pred_region
      %43 = vsyncadd [#allocation6], 0
      %s45 = sshll.u32 %s2, 4
      %s46 = int_to_ptr.hbm [resolvable:$true] %s45
      %s47 = sshll.u32 [#allocation7], 4
      %s48 = int_to_ptr.vmem [resolvable:$true] %s47
      %50 = dma.hbm_to_vmem [thread:$0]  %s46, 32, %s48, [#allocation6]
    $region13: #{tpu_custom_call.1} parent=1 // pred_fallthru
      _
    // Predicated region
    $region14: #{tpu_custom_call.1} parent=1 // pred_check
      _
    $region15: #{tpu_custom_call.1} parent=1 // pred_check_branch
      %52 = sbr.rel (0) target = $region17
    $region16: #{tpu_custom_call.1} parent=1 // pred_region
      _
    $region17: #{tpu_custom_call.1} parent=1 // pred_fallthru
      _
    // Predicated region
    $region18: #{tpu_custom_call.1} parent=1 // pred_check
      _
    $region19: #{tpu_custom_call.1} parent=1 // pred_check_branch
      %54 = sbr.rel (0) target = $region21
    $region20: #{tpu_custom_call.1} parent=1 // pred_region
      %56 = vsyncadd [#allocation9], 0
      %s58 = sshll.u32 %s4, 4
      %s59 = int_to_ptr.hbm [resolvable:$true] %s58
      %s60 = sshll.u32 [#allocation8], 4
      %s61 = int_to_ptr.vmem [resolvable:$true] %s60
      %63 = dma.hbm_to_vmem [thread:$0]  %s59, 32, %s61, [#allocation9]
    $region21: #{tpu_custom_call.1} parent=1 // pred_fallthru
      _
    // Predicated region
    $region22: #{tpu_custom_call.1} parent=1 // pred_check
      _
    $region23: #{tpu_custom_call.1} parent=1 // pred_check_branch
      %65 = sbr.rel (0) target = $region25
    $region24: #{tpu_custom_call.1} parent=1 // pred_region
      %67 = dma.done [#allocation3], 512
    $region25: #{tpu_custom_call.1} parent=1 // pred_fallthru
      _
    // Predicated region
    $region26: #{tpu_custom_call.1} parent=1 // pred_check
      _
    $region27: #{tpu_custom_call.1} parent=1 // pred_check_branch
      %69 = sbr.rel (0) target = $region29
    $region28: #{tpu_custom_call.1} parent=1 // pred_region
      %71 = dma.done [#allocation6], 256
    $region29: #{tpu_custom_call.1} parent=1 // pred_fallthru
      _
    // Predicated region
    $region30: #{tpu_custom_call.1} parent=1 // pred_check
      _
    $region31: #{tpu_custom_call.1} parent=1 // pred_check_branch
      %73 = sbr.rel (0) target = $region33
    $region32: #{tpu_custom_call.1} parent=1 // pred_region
      %75 = dma.done [#allocation6], 32
    $region33: #{tpu_custom_call.1} parent=1 // pred_fallthru
      _
    // Predicated region
    $region34: #{tpu_custom_call.1} parent=1 // pred_check
      _
    $region35: #{tpu_custom_call.1} parent=1 // pred_check_branch
      %77 = sbr.rel (0) target = $region37
    $region36: #{tpu_custom_call.1} parent=1 // pred_region
      %79 = dma.done [#allocation9], 32
    $region37: #{tpu_custom_call.1} parent=1 // pred_fallthru
      _
    %v80 = vld [vmem:[#allocation2] sm:$0xff]
    %v81 = vld [vmem:[#allocation2 + $0x8] sm:$0xff]
    %v82 = vld [vmem:[#allocation2 + $0x10] sm:$0xff]
    %v83 = vld [vmem:[#allocation2 + $0x18] sm:$0xff]
    %v84 = vunpack.c.l.bf16 %v80
    %v85 = vunpack.c.h.bf16 %v80
    %v86 = vunpack.c.l.bf16 %v81
    %v87 = vunpack.c.h.bf16 %v81
    %v88 = vunpack.c.l.bf16 %v82
    %v89 = vunpack.c.h.bf16 %v82
    %v90 = vunpack.c.l.bf16 %v83
    %v91 = vunpack.c.h.bf16 %v83
    %v92 = vld [vmem:[#allocation5] sm:$0xff]
    %v93 = vld [vmem:[#allocation5 + $0x8] sm:$0xff]
    %v94 = vunpack.c.l.bf16 %v92
    %v95 = vunpack.c.h.bf16 %v92
    %v96 = vunpack.c.l.bf16 %v93
    %v97 = vunpack.c.h.bf16 %v93
    %v98 = vadd.f32 %v84, %v94
    %v99 = vadd.f32 %v85, %v95
    %v100 = vadd.f32 %v86, %v96
    %v101 = vadd.f32 %v87, %v97
    %v102 = vadd.f32 %v88, %v94
    %v103 = vadd.f32 %v89, %v95
    %v104 = vadd.f32 %v90, %v96
    %v105 = vadd.f32 %v91, %v97
    %v106 = vld [vmem:[#allocation7] sm:$0x3]
    %v107 = vunpack.c.l.bf16 %v106
    %v109 = vperm.slane %v107, 0
    %v110 = vperm.slane %v107, 2
    %v113 = vperm.slane %v109, 0
    %v114 = vperm.slane %v110, 0
    %v115 = vadd.f32 %v98, %v113
    %v116 = vadd.f32 %v99, %v114
    %v117 = vadd.f32 %v100, %v113
    %v118 = vadd.f32 %v101, %v114
    %v119 = vadd.f32 %v102, %v113
    %v120 = vadd.f32 %v103, %v114
    %v121 = vadd.f32 %v104, %v113
    %v122 = vadd.f32 %v105, %v114
    %v123 = vadd.f32 %v115, %v116
    %124 = vadd.xlane.f32.xlu0 %v123
    %v125 = vpop.xlane.xlu0 %124
    %v126 = vadd.f32 %v117, %v118
    %127 = vadd.xlane.f32.xlu0 %v126
    %v128 = vpop.xlane.xlu0 %127
    %v129 = vadd.f32 %v119, %v120
    %130 = vadd.xlane.f32.xlu0 %v129
    %v131 = vpop.xlane.xlu0 %130
    %v132 = vadd.f32 %v121, %v122
    %133 = vadd.xlane.f32.xlu0 %v132
    %v134 = vpop.xlane.xlu0 %133
    %v135 = vrcp.pop 256.0
    %v136 = vmul.f32 256.0, %v135
    %v137 = vsub.f32 1.0, %v136
    %v138 = vmul.f32 %v135, %v137
    %v139 = vadd.f32 %v135, %v138
    %vm140 = vweird.f32 %v135
    %v141 = vsel %vm140, %v135, %v139
    %v142 = vmul.f32 %v125, %v141
    %v143 = vmul.f32 %v128, %v141
    %v144 = vmul.f32 %v131, %v141
    %v145 = vmul.f32 %v134, %v141
    %v146 = vsub.f32 %v115, %v142
    %v147 = vsub.f32 %v116, %v142
    %v148 = vsub.f32 %v117, %v143
    %v149 = vsub.f32 %v118, %v143
    %v150 = vsub.f32 %v119, %v144
    %v151 = vsub.f32 %v120, %v144
    %v152 = vsub.f32 %v121, %v145
    %v153 = vsub.f32 %v122, %v145
    %v154 = vmul.f32 %v146, %v146
    %v155 = vmul.f32 %v147, %v147
    %v156 = vmul.f32 %v148, %v148
    %v157 = vmul.f32 %v149, %v149
    %v158 = vmul.f32 %v150, %v150
    %v159 = vmul.f32 %v151, %v151
    %v160 = vmul.f32 %v152, %v152
    %v161 = vmul.f32 %v153, %v153
    %v162 = vadd.f32 %v154, %v155
    %163 = vadd.xlane.f32.xlu0 %v162
    %v164 = vpop.xlane.xlu0 %163
    %v165 = vadd.f32 %v156, %v157
    %166 = vadd.xlane.f32.xlu0 %v165
    %v167 = vpop.xlane.xlu0 %166
    %v168 = vadd.f32 %v158, %v159
    %169 = vadd.xlane.f32.xlu0 %v168
    %v170 = vpop.xlane.xlu0 %169
    %v171 = vadd.f32 %v160, %v161
    %172 = vadd.xlane.f32.xlu0 %v171
    %v173 = vpop.xlane.xlu0 %172
    %v174 = vmul.f32 %v164, %v141
    %v175 = vmul.f32 %v167, %v141
    %v176 = vmul.f32 %v170, %v141
    %v177 = vmul.f32 %v173, %v141
    %v178 = vadd.f32 %v174, 1e-12
    %v179 = vadd.f32 %v175, 1e-12
    %v180 = vadd.f32 %v176, 1e-12
    %v181 = vadd.f32 %v177, 1e-12
    %v182 = vrsqrt.pop %v178
    %v183 = vmul.f32 %v182, %v178
    %v184 = vmul.f32 %v183, %v182
    %v185 = vmul.f32 0.5, %v184
    %v186 = vsub.f32 1.5, %v185
    %v187 = vmul.f32 %v182, %v186
    %vm188 = vweird.f32 %v178
    %vm189 = vweird.f32 %v182
    %vm190 = vmor %vm188, %vm189
    %v191 = vsel %vm190, %v182, %v187
    %v192 = vrsqrt.pop %v179
    %v193 = vmul.f32 %v192, %v179
    %v194 = vmul.f32 %v193, %v192
    %v195 = vmul.f32 0.5, %v194
    %v196 = vsub.f32 1.5, %v195
    %v197 = vmul.f32 %v192, %v196
    %vm198 = vweird.f32 %v179
    %vm199 = vweird.f32 %v192
    %vm200 = vmor %vm198, %vm199
    %v201 = vsel %vm200, %v192, %v197
    %v202 = vrsqrt.pop %v180
    %v203 = vmul.f32 %v202, %v180
    %v204 = vmul.f32 %v203, %v202
    %v205 = vmul.f32 0.5, %v204
    %v206 = vsub.f32 1.5, %v205
    %v207 = vmul.f32 %v202, %v206
    %vm208 = vweird.f32 %v180
    %vm209 = vweird.f32 %v202
    %vm210 = vmor %vm208, %vm209
    %v211 = vsel %vm210, %v202, %v207
    %v212 = vrsqrt.pop %v181
    %v213 = vmul.f32 %v212, %v181
    %v214 = vmul.f32 %v213, %v212
    %v215 = vmul.f32 0.5, %v214
    %v216 = vsub.f32 1.5, %v215
    %v217 = vmul.f32 %v212, %v216
    %vm218 = vweird.f32 %v181
    %vm219 = vweird.f32 %v212
    %vm220 = vmor %vm218, %vm219
    %v221 = vsel %vm220, %v212, %v217
    %v222 = vmul.f32 %v146, %v191
    %v223 = vmul.f32 %v147, %v191
    %v224 = vmul.f32 %v148, %v201
    %v225 = vmul.f32 %v149, %v201
    %v226 = vmul.f32 %v150, %v211
    %v227 = vmul.f32 %v151, %v211
    %v228 = vmul.f32 %v152, %v221
    %v229 = vmul.f32 %v153, %v221
    %v230 = vld [vmem:[%s3] sm:$0x3]
    %v232 = vperm.slane %v230, 0
    %v233 = vperm.slane %v230, 1
    %v236 = vmul.f32 %v222, %v232
    %v237 = vmul.f32 %v223, %v233
    %v238 = vmul.f32 %v224, %v232
    %v239 = vmul.f32 %v225, %v233
    %v240 = vmul.f32 %v226, %v232
    %v241 = vmul.f32 %v227, %v233
    %v242 = vmul.f32 %v228, %v232
    %v243 = vmul.f32 %v229, %v233
    %v244 = vld [vmem:[#allocation8] sm:$0x3]
    %v246 = vperm.slane %v244, 0
    %v247 = vperm.slane %v244, 1
    %v250 = vadd.f32 %v236, %v246
    %v251 = vadd.f32 %v237, %v247
    %v252 = vadd.f32 %v238, %v246
    %v253 = vadd.f32 %v239, %v247
    %v254 = vadd.f32 %v240, %v246
    %v255 = vadd.f32 %v241, %v247
    %v256 = vadd.f32 %v242, %v246
    %v257 = vadd.f32 %v243, %v247
    %v258 = vpack.c.bf16 %v251, %v250
    %v259 = vpack.c.bf16 %v253, %v252
    %v260 = vpack.c.bf16 %v255, %v254
    %v261 = vpack.c.bf16 %v257, %v256
    %262 = vst [vmem:[#allocation10] sm:$0xff] %v258
    %263 = vst [vmem:[#allocation10 + $0x8] sm:$0xff] %v259
    %264 = vst [vmem:[#allocation10 + $0x10] sm:$0xff] %v260
    %265 = vst [vmem:[#allocation10 + $0x18] sm:$0xff] %v261
    // Predicated region
    $region38: #{tpu_custom_call.1} parent=1 // pred_check
      _
    $region39: #{tpu_custom_call.1} parent=1 // pred_check_branch
      %267 = sbr.rel (0) target = $region41
    $region40: #{tpu_custom_call.1} parent=1 // pred_region
      %269 = vsyncadd [#allocation4], 0
      %s270 = sshll.u32 [#allocation10], 4
      %s271 = int_to_ptr.vmem [resolvable:$true] %s270
      %s272 = sshll.u32 %s5, 4
      %s273 = int_to_ptr.hbm [resolvable:$true] %s272
      %278 = dma.vmem_to_hbm [thread:$0]  %s271, 512, %s273, [#allocation4], 128, 128, 8
    $region41: #{tpu_custom_call.1} parent=1 // pred_fallthru
      _
    // Predicated region
    $region42: #{tpu_custom_call.1} parent=1 // pred_check
      _
    $region43: #{tpu_custom_call.1} parent=1 // pred_check_branch
      %280 = sbr.rel (0) target = $region45
    $region44: #{tpu_custom_call.1} parent=1 // pred_region
      %282 = dma.done [#allocation4], 512
    $region45: #{tpu_custom_call.1} parent=1 // pred_fallthru
      _
    %283 = vsyncpa [#allocation3], 1
    %284 = vsyncpa [#allocation6], 1
    %285 = vsyncpa [#allocation9], 1
    %286 = vsyncpa [#allocation4], 1

</llo_original>
